<compile_context>
chip_gen: v7x
topology: tpu7x:2x2x1
jax: 0.10.0
libtpu: 0.0.40
codegen_flags: <defaults>
</compile_context>

<pallas_src>
import jax
import jax.numpy as jnp
from jax.experimental import pallas as pl
from jax.experimental.pallas import tpu as pltpu


def _round_up(x, m):
    return (x + m - 1) // m * m


def _im2col_nchw(x, K=3):
    """3x3 same-padded patches from NCHW input.

    Returns [B, H*W, C*K*K] with inner ordering (c, kh, kw), matching
    PyTorch conv weight.reshape(F, C*K*K)."""
    B, C, H, W = x.shape
    pad = K // 2
    x_pad = jnp.pad(x, ((0, 0), (0, 0), (pad, pad), (pad, pad)))
    taps = [x_pad[:, :, kh:kh + H, kw:kw + W]
            for kh in range(K) for kw in range(K)]          # each [B, C, H, W]
    patches = jnp.stack(taps, axis=2)                       # [B, C, K*K, H, W]
    patches = jnp.transpose(patches, (0, 3, 4, 1, 2))       # [B, H, W, C, K*K]
    return patches.reshape(B, H * W, C * K * K)


def image_classifier_forward(x, wconv, bconv, wcls, bcls, *, thw=128):
    """x: NCHW float32.  wconv: [F, C, K, K], bconv: [F],
    wcls: [T, F] (PyTorch Linear layout), bcls: [T]."""
    B, C, H, W = x.shape
    F = wconv.shape[0]
    K = wconv.shape[-1]
    T = wcls.shape[0]
    HW = H * W
    CKK = C * K * K
    LANE = 128

    CKKp = _round_up(CKK, LANE)          # contraction dim, lane-aligned
    Fp = _round_up(F, LANE)              # conv feature dim, lane-aligned
    Tp = _round_up(T, LANE)              # classifier output dim, lane-dense
    THW = min(thw, _round_up(HW, 8))     # spatial tile (sublane-aligned)
    HWp = _round_up(HW, THW)
    n_tiles = HWp // THW
    inv_hw = 1.0 / HW

    # im2col (still materialized in HBM; streamed tile-by-tile through VMEM).
    # TODO(synk): for ResNet-scale inputs do im2col in-kernel from an NHWC
    # tile to avoid the K*K HBM blow-up.
    patches = _im2col_nchw(x.astype(jnp.float32), K)                    # [B, HW, CKK]
    patches = jnp.pad(patches, ((0, 0), (0, HWp - HW), (0, CKKp - CKK)))
    patches = patches.astype(jnp.bfloat16)                              # MXU operand

    wconv_m = jnp.pad(wconv.reshape(F, CKK).T.astype(jnp.float32),
                      ((0, CKKp - CKK), (0, Fp - F))).astype(jnp.bfloat16)  # [CKKp, Fp]
    bconv_m = jnp.pad(bconv.astype(jnp.float32), (0, Fp - F)).reshape(1, Fp)
    wcls_m = jnp.pad(wcls.T.astype(jnp.float32),
                     ((0, Fp - F), (0, Tp - T)))                        # [Fp, Tp]
    bcls_m = jnp.pad(bcls.astype(jnp.float32), (0, Tp - T)).reshape(1, Tp)

    def kernel(p_ref, wconv_ref, bconv_ref, wcls_ref, bcls_ref, out_ref, acc_ref):
        t = pl.program_id(0)

        @pl.when(t == 0)
        def _init():
            acc_ref[...] = jnp.zeros_like(acc_ref)

        # conv as matmul on the MXU: bf16 operands, f32 accumulation.
        p = p_ref[...].reshape(B * THW, CKKp)                        # [B*THW, CKKp]
        feat = jnp.dot(p, wconv_ref[...],
                       preferred_element_type=jnp.float32)           # [B*THW, Fp] f32
        feat = jnp.maximum(feat + bconv_ref[...], 0.0)               # bias + ReLU (VPU, f32)
        feat = feat.reshape(B, THW, Fp)
        if HW % THW != 0:
            # mask zero-padded spatial rows (relu(bias) would otherwise leak in)
            row = t * THW + jax.lax.broadcasted_iota(jnp.int32, (1, THW, 1), 1)
            feat = jnp.where(row < HW, feat, 0.0)
        # partial global-average-pool: plain reduction, no pooling matrix.
        acc_ref[...] += jnp.sum(feat, axis=1)                        # [B, Fp]

        @pl.when(t == pl.num_programs(0) - 1)
        def _finalize():
            pooled = acc_ref[...] * inv_hw                           # mean over H*W
            out_ref[...] = (jnp.dot(pooled, wcls_ref[...],
                                    preferred_element_type=jnp.float32)
                            + bcls_ref[...])                         # [B, Tp]

    flops = 2 * B * HWp * CKKp * Fp + 2 * B * Fp * Tp
    bytes_accessed = (patches.size * 2 + wconv_m.size * 2
                      + (bconv_m.size + wcls_m.size + bcls_m.size + B * Tp) * 4)

    out = pl.pallas_call(
        kernel,
        out_shape=jax.ShapeDtypeStruct((B, Tp), jnp.float32),
        grid=(n_tiles,),
        in_specs=[
            pl.BlockSpec((B, THW, CKKp), lambda t: (0, t, 0)),   # streamed patches
            pl.BlockSpec((CKKp, Fp), lambda t: (0, 0)),          # conv weight (resident)
            pl.BlockSpec((1, Fp), lambda t: (0, 0)),             # conv bias
            pl.BlockSpec((Fp, Tp), lambda t: (0, 0)),            # classifier weight
            pl.BlockSpec((1, Tp), lambda t: (0, 0)),             # classifier bias
        ],
        out_specs=pl.BlockSpec((B, Tp), lambda t: (0, 0)),
        scratch_shapes=[pltpu.VMEM((B, Fp), jnp.float32)],       # pooled-sum accumulator
        compiler_params=pltpu.CompilerParams(
            dimension_semantics=("arbitrary",)),                 # reduction axis
        cost_estimate=pl.CostEstimate(
            flops=flops, transcendentals=0, bytes_accessed=bytes_accessed),
    )(patches, wconv_m, bconv_m, wcls_m, bcls_m)

    return out[:, :T]


def _reference_forward(x, wconv, bconv, wcls, bcls):
    """Pure-JAX f32 reference matching the PyTorch module semantics."""
    feat = jax.lax.conv_general_dilated(
        x.astype(jnp.float32), wconv.astype(jnp.float32),
        window_strides=(1, 1), padding="SAME",
        dimension_numbers=("NCHW", "OIHW", "NCHW"))
    feat = jax.nn.relu(feat + bconv.reshape(1, -1, 1, 1))
    feat = feat.mean(axis=(2, 3))                            # global avg pool -> [B, F]
    return feat @ wcls.T + bcls                              # Linear -> [B, T]


if __name__ == "__main__":
    # Small shapes consistent with the forward: batch=2, in-channels=4,
    # spatial=16x16, feature_dim=32, num_targets=5.
    B, C, H, W = 2, 4, 16, 16
    F, T, K = 32, 5, 3

    key = jax.random.PRNGKey(0)
    kx, kwc, kbc, kwl, kbl = jax.random.split(key, 5)
    x = jax.random.normal(kx, (B, C, H, W), dtype=jnp.float32)
    wconv = jax.random.normal(kwc, (F, C, K, K), dtype=jnp.float32) * 0.1
    bconv = jax.random.normal(kbc, (F,), dtype=jnp.float32) * 0.1
    wcls = jax.random.normal(kwl, (T, F), dtype=jnp.float32) * 0.1
    bcls = jax.random.normal(kbl, (T,), dtype=jnp.float32) * 0.1

    fwd = jax.jit(image_classifier_forward)
    pred = jax.block_until_ready(fwd(x, wconv, bconv, wcls, bcls))

    ref = _reference_forward(x, wconv, bconv, wcls, bcls)
    assert pred.shape == (B, T)
    # bf16 MXU operands vs f32 reference: relaxed tolerance (observed err ~1e-3).
    assert jnp.allclose(pred, ref, atol=2e-2, rtol=2e-2), (pred, ref)

    print("KERNEL_OK")
</pallas_src>

<mosaic_0001>
module attributes {stable_mosaic.version = 11 : i64} {
  func.func @kernel(%arg0: i32, %arg1: memref<2x128x128xbf16, #tpu.memory_space<vmem>>, %arg2: memref<128x128xbf16, #tpu.memory_space<vmem>>, %arg3: memref<1x128xf32, #tpu.memory_space<vmem>>, %arg4: memref<128x128xf32, #tpu.memory_space<vmem>>, %arg5: memref<1x128xf32, #tpu.memory_space<vmem>>, %arg6: memref<2x128xf32, #tpu.memory_space<vmem>>, %arg7: memref<2x128xf32, #tpu.memory_space<vmem>>) attributes {dimension_semantics = [#tpu.dimension_semantics<arbitrary>], iteration_bounds = array<i64: 2>, scalar_prefetch = 0 : i64, scratch_operands = 1 : i64, tpu.core_type = #tpu.core_type<tc>, window_params = [{transform_indices = @transform_0, window_bounds = array<i64: 2, 128, 128>}, {pipeline_mode = #tpu.pipeline_mode<synchronous>, transform_indices = @transform_1, window_bounds = array<i64: 128, 128>}, {pipeline_mode = #tpu.pipeline_mode<synchronous>, transform_indices = @transform_2, window_bounds = array<i64: 1, 128>}, {pipeline_mode = #tpu.pipeline_mode<synchronous>, transform_indices = @transform_3, window_bounds = array<i64: 128, 128>}, {pipeline_mode = #tpu.pipeline_mode<synchronous>, transform_indices = @transform_4, window_bounds = array<i64: 1, 128>}, {pipeline_mode = #tpu.pipeline_mode<synchronous>, transform_indices = @transform_5, window_bounds = array<i64: 2, 128>}]} {
    %c0_i32 = arith.constant 0 : i32
    %0 = arith.cmpi eq, %arg0, %c0_i32 : i32
    %1 = arith.extui %0 : i1 to i32
    %c0_i32_0 = arith.constant 0 : i32
    %2 = arith.cmpi ne, %1, %c0_i32_0 : i32
    scf.if %2 {
      %cst_14 = arith.constant 0.000000e+00 : f32
      %20 = vector.broadcast %cst_14 : f32 to vector<2x128xf32>
      %c0_15 = arith.constant 0 : index
      %c0_16 = arith.constant 0 : index
      %21 = vector.load %arg7[%c0_15, %c0_16] : memref<2x128xf32, #tpu.memory_space<vmem>>, vector<2x128xf32>
      tpu.vector_store %arg7[%c0_15, %c0_16], %20 {strides = array<i32>} : memref<2x128xf32, #tpu.memory_space<vmem>>, vector<2x128xf32>,
    } else {
    }
    %c0 = arith.constant 0 : index
    %c0_1 = arith.constant 0 : index
    %c0_2 = arith.constant 0 : index
    %3 = vector.load %arg1[%c0, %c0_1, %c0_2] : memref<2x128x128xbf16, #tpu.memory_space<vmem>>, vector<2x128x128xbf16>
    %4 = vector.shape_cast %3 : vector<2x128x128xbf16> to vector<256x128xbf16>
    %c0_3 = arith.constant 0 : index
    %c0_4 = arith.constant 0 : index
    %5 = vector.load %arg2[%c0_3, %c0_4] : memref<128x128xbf16, #tpu.memory_space<vmem>>, vector<128x128xbf16>
    %cst = arith.constant dense<0.000000e+00> : vector<256x128xf32>
    %6 = tpu.matmul %4, %5, %cst {dimension_numbers = #tpu.dot_dimension_numbers<[1], [0], [0], [1], [0, 0, 1, 1], [], []>} : vector<256x128xbf16>, vector<128x128xbf16>, vector<256x128xf32> -> vector<256x128xf32>
    %c0_5 = arith.constant 0 : index
    %c0_6 = arith.constant 0 : index
    %7 = vector.load %arg3[%c0_5, %c0_6] : memref<1x128xf32, #tpu.memory_space<vmem>>, vector<1x128xf32>
    %8 = vector.broadcast %7 : vector<1x128xf32> to vector<256x128xf32>
    %9 = arith.addf %6, %8 : vector<256x128xf32>
    %cst_7 = arith.constant 0.000000e+00 : f32
    %10 = vector.broadcast %cst_7 : f32 to vector<256x128xf32>
    %11 = arith.maximumf %9, %10 : vector<256x128xf32>
    %12 = vector.shape_cast %11 : vector<256x128xf32> to vector<2x128x128xf32>
    %c0_8 = arith.constant 0 : index
    %c0_9 = arith.constant 0 : index
    %13 = vector.load %arg7[%c0_8, %c0_9] : memref<2x128xf32, #tpu.memory_space<vmem>>, vector<2x128xf32>
    %cst_10 = arith.constant dense<0.000000e+00> : vector<2x128xf32>
    %14 = vector.multi_reduction <add>, %12, %cst_10 [1] : vector<2x128x128xf32> to vector<2x128xf32>
    %15 = arith.addf %13, %14 : vector<2x128xf32>
    %c0_11 = arith.constant 0 : index
    %c0_12 = arith.constant 0 : index
    %16 = vector.load %arg7[%c0_11, %c0_12] : memref<2x128xf32, #tpu.memory_space<vmem>>, vector<2x128xf32>
    tpu.vector_store %arg7[%c0_11, %c0_12], %15 {strides = array<i32>} : memref<2x128xf32, #tpu.memory_space<vmem>>, vector<2x128xf32>,
    %c1_i32 = arith.constant 1 : i32
    %17 = arith.cmpi eq, %arg0, %c1_i32 : i32
    %18 = arith.extui %17 : i1 to i32
    %c0_i32_13 = arith.constant 0 : i32
    %19 = arith.cmpi ne, %18, %c0_i32_13 : i32
    scf.if %19 {
      %c0_14 = arith.constant 0 : index
      %c0_15 = arith.constant 0 : index
      %20 = vector.load %arg7[%c0_14, %c0_15] : memref<2x128xf32, #tpu.memory_space<vmem>>, vector<2x128xf32>
      %cst_16 = arith.constant 3.906250e-03 : f32
      %21 = vector.broadcast %cst_16 : f32 to vector<2x128xf32>
      %22 = arith.mulf %20, %21 : vector<2x128xf32>
      %c0_17 = arith.constant 0 : index
      %c0_18 = arith.constant 0 : index
      %23 = vector.load %arg4[%c0_17, %c0_18] : memref<128x128xf32, #tpu.memory_space<vmem>>, vector<128x128xf32>
      %cst_19 = arith.constant dense<0.000000e+00> : vector<2x128xf32>
      %24 = tpu.matmul %22, %23, %cst_19 {dimension_numbers = #tpu.dot_dimension_numbers<[1], [0], [0], [1], [0, 0, 1, 1], [], []>} : vector<2x128xf32>, vector<128x128xf32>, vector<2x128xf32> -> vector<2x128xf32>
      %c0_20 = arith.constant 0 : index
      %c0_21 = arith.constant 0 : index
      %25 = vector.load %arg5[%c0_20, %c0_21] : memref<1x128xf32, #tpu.memory_space<vmem>>, vector<1x128xf32>
      %26 = vector.broadcast %25 : vector<1x128xf32> to vector<2x128xf32>
      %27 = arith.addf %24, %26 : vector<2x128xf32>
      %c0_22 = arith.constant 0 : index
      %c0_23 = arith.constant 0 : index
      %28 = vector.load %arg6[%c0_22, %c0_23] : memref<2x128xf32, #tpu.memory_space<vmem>>, vector<2x128xf32>
      tpu.vector_store %arg6[%c0_22, %c0_23], %27 {strides = array<i32>} : memref<2x128xf32, #tpu.memory_space<vmem>>, vector<2x128xf32>,
    } else {
    }
    return
  }
  func.func @transform_0(%arg0: i32) -> (i32, i32, i32) {
    %c0_i32 = arith.constant 0 : i32
    %c0_i32_0 = arith.constant 0 : i32
    %c0_i32_1 = arith.constant 0 : i32
    return %c0_i32, %arg0, %c0_i32_0 : i32, i32, i32
  }
  func.func @transform_1(%arg0: i32) -> (i32, i32) {
    %c0_i32 = arith.constant 0 : i32
    %c0_i32_0 = arith.constant 0 : i32
    %c0_i32_1 = arith.constant 0 : i32
    return %c0_i32, %c0_i32_0 : i32, i32
  }
  func.func @transform_2(%arg0: i32) -> (i32, i32) {
    %c0_i32 = arith.constant 0 : i32
    %c0_i32_0 = arith.constant 0 : i32
    %c0_i32_1 = arith.constant 0 : i32
    return %c0_i32, %c0_i32_0 : i32, i32
  }
  func.func @transform_3(%arg0: i32) -> (i32, i32) {
    %c0_i32 = arith.constant 0 : i32
    %c0_i32_0 = arith.constant 0 : i32
    %c0_i32_1 = arith.constant 0 : i32
    return %c0_i32, %c0_i32_0 : i32, i32
  }
  func.func @transform_4(%arg0: i32) -> (i32, i32) {
    %c0_i32 = arith.constant 0 : i32
    %c0_i32_0 = arith.constant 0 : i32
    %c0_i32_1 = arith.constant 0 : i32
    return %c0_i32, %c0_i32_0 : i32, i32
  }
  func.func @transform_5(%arg0: i32) -> (i32, i32) {
    %c0_i32 = arith.constant 0 : i32
    %c0_i32_0 = arith.constant 0 : i32
    %c0_i32_1 = arith.constant 0 : i32
    return %c0_i32, %c0_i32_0 : i32, i32
  }
}

</mosaic_0001>

<llo_original>
// kernel: image_classifier_forward.1
$region0: #{image_classifier_forward.1}
  #allocation0 [shape = 'u32[]', space=smem, size = 0x4, offset = 0x4, fixed_abs, tag = 'smem constant byte address 0x4 - core index']
  #allocation1 [shape = 'u32[144,128]{1,0:T(1,128)}', space=vmem, size = 0x12000, scoped, tag = 'internal scratch']
  #allocation2 [shape = 'f32[2,128]{1,0:T(2,128)}', space=vmem, size = 0x400, scoped, tag = 'scratch operand']
  %s0 = inlined_call_operand.vmem [shape: bf16[2,256,128], index: 0, kind: input, shape index: {}]
  %s1 = inlined_call_operand.vmem [shape: bf16[128,128], index: 1, kind: input, shape index: {}]
  %s2 = inlined_call_operand.vmem [shape: f32[1,128], index: 2, kind: input, shape index: {}]
  %s3 = inlined_call_operand.vmem [shape: f32[128,128], index: 3, kind: input, shape index: {}]
  %s4 = inlined_call_operand.vmem [shape: f32[1,128], index: 4, kind: input, shape index: {}]
  %s5 = inlined_call_operand.hbm [shape: f32[2,128], index: 5, kind: output, shape index: {}]
  %s6 = sld [smem:[#allocation0]]
  $region102: #{image_classifier_forward.1} parent=0
    _
  %s8 = ssub.s32 1, %s6
  %s9 = scalar_select 0, %s8, %s6
  $region1: #{image_classifier_forward.1} parent=0
    #allocation3 [shape = 'u8[131072]{0}', space=vmem, size = 0x20000, scoped, tag = 'input window, operand 0']
    #allocation4 [shape = 'u8[1024]{0}', space=vmem, size = 0x400, scoped, tag = 'output window, operand 0, single buffered']
    #allocation5 [shape = 's32[2]{0}', space=sflag, size = 0x8, scoped, tag = 'scoped memory for image_classifier_forward.1']
    %10 = vsyncpa [#allocation5], 0
    loop: start=0, step=1, limit=4
    $region2: #{image_classifier_forward.1} parent=1 // loop_pre_header
      _
    $region3: #{image_classifier_forward.1} parent=1 // loop_header
      %s12 = sphi 0, %s16
      %p13 = scmp.ge.s32.totalorder %s12, 4
      %s22 = sphi 0, %s24
      %s25 = sphi 0, %s22
      %s26 = sphi 0, %s25
      %s42 = sphi 0, %s26
      %s46 = sphi 0, %s46
      %s48 = sphi 0, %s46
      %s49 = sphi 0, %s48
      %s63 = sphi 0, %s49
      %s67 = sphi 0, %s67
      %s69 = sphi 0, %s67
      %s70 = sphi 0, %s69
      %s84 = sphi 0, %s70
      %s88 = sphi 0, %s88
      %s90 = sphi 0, %s88
      %s91 = sphi 0, %s90
      %s105 = sphi 0, %s91
      %s109 = sphi 0, %s109
      %s111 = sphi 0, %s109
      %s112 = sphi 0, %s111
      %s126 = sphi 0, %s112
      %s130 = sphi 0, %s130
      %s132 = sphi 0, %s130
      %s133 = sphi 0, %s132
      %s147 = sphi 0, %s133
    $region4: #{image_classifier_forward.1} parent=1 // loop_header_branch
      %15 = sbr.rel (%p13) target = $region8
    $region5: #{image_classifier_forward.1} parent=1 // loop_body
      %s17 = ssub.s32 %s12, 1
      %s18 = ssub.s32 %s12, 2
      %s19 = sadd.s32 %s12, 1
      %s20 = ssub.s32 %s12, %s19
      %p21 = scmp.eq.s32.totalorder %s20, 0
      %s23 = sadd.s32 %s22, 1
      %s24 = scalar_select %p21, %s22, %s23
      %p27 = pneg %p21
      %p28 = scmp.eq.s32.totalorder %s12, 1
      %p29 = por %p27, %p28
      %p30 = scmp.ne.s32.totalorder %s22, %s25
      %p31 = scmp.eq.s32.totalorder %s12, 0
      %p32 = por %p30, %p31
      %p33 = scmp.ne.s32.totalorder %s22, %s25
      %p34 = scmp.eq.s32.totalorder %s17, 1
      %p35 = por %p33, %p34
      %p36 = scmp.ne.s32.totalorder %s25, %s26
      %p37 = scmp.eq.s32.totalorder %s17, 0
      %p38 = por %p36, %p37
      %p39 = scmp.ne.s32.totalorder %s25, %s26
      %p40 = scmp.eq.s32.totalorder %s18, 1
      %p41 = por %p39, %p40
      %p43 = scmp.ne.s32.totalorder %s26, %s42
      %p44 = scmp.eq.s32.totalorder %s18, 0
      %p45 = por %p43, %p44
      %s47 = sadd.s32 %s46, 1
      %p50 = scmp.eq.s32.totalorder %s12, 1
      %p51 = scmp.ne.s32.totalorder %s46, %s48
      %p52 = scmp.eq.s32.totalorder %s12, 0
      %p53 = por %p51, %p52
      %p54 = scmp.ne.s32.totalorder %s46, %s48
      %p55 = scmp.eq.s32.totalorder %s17, 1
      %p56 = por %p54, %p55
      %p57 = scmp.ne.s32.totalorder %s48, %s49
      %p58 = scmp.eq.s32.totalorder %s17, 0
      %p59 = por %p57, %p58
      %p60 = scmp.ne.s32.totalorder %s48, %s49
      %p61 = scmp.eq.s32.totalorder %s18, 1
      %p62 = por %p60, %p61
      %p64 = scmp.ne.s32.totalorder %s49, %s63
      %p65 = scmp.eq.s32.totalorder %s18, 0
      %p66 = por %p64, %p65
      %s68 = sadd.s32 %s67, 1
      %p71 = scmp.eq.s32.totalorder %s12, 1
      %p72 = scmp.ne.s32.totalorder %s67, %s69
      %p73 = scmp.eq.s32.totalorder %s12, 0
      %p74 = por %p72, %p73
      %p75 = scmp.ne.s32.totalorder %s67, %s69
      %p76 = scmp.eq.s32.totalorder %s17, 1
      %p77 = por %p75, %p76
      %p78 = scmp.ne.s32.totalorder %s69, %s70
      %p79 = scmp.eq.s32.totalorder %s17, 0
      %p80 = por %p78, %p79
      %p81 = scmp.ne.s32.totalorder %s69, %s70
      %p82 = scmp.eq.s32.totalorder %s18, 1
      %p83 = por %p81, %p82
      %p85 = scmp.ne.s32.totalorder %s70, %s84
      %p86 = scmp.eq.s32.totalorder %s18, 0
      %p87 = por %p85, %p86
      %s89 = sadd.s32 %s88, 1
      %p92 = scmp.eq.s32.totalorder %s12, 1
      %p93 = scmp.ne.s32.totalorder %s88, %s90
      %p94 = scmp.eq.s32.totalorder %s12, 0
      %p95 = por %p93, %p94
      %p96 = scmp.ne.s32.totalorder %s88, %s90
      %p97 = scmp.eq.s32.totalorder %s17, 1
      %p98 = por %p96, %p97
      %p99 = scmp.ne.s32.totalorder %s90, %s91
      %p100 = scmp.eq.s32.totalorder %s17, 0
      %p101 = por %p99, %p100
      %p102 = scmp.ne.s32.totalorder %s90, %s91
      %p103 = scmp.eq.s32.totalorder %s18, 1
      %p104 = por %p102, %p103
      %p106 = scmp.ne.s32.totalorder %s91, %s105
      %p107 = scmp.eq.s32.totalorder %s18, 0
      %p108 = por %p106, %p107
      %s110 = sadd.s32 %s109, 1
      %p113 = scmp.eq.s32.totalorder %s12, 1
      %p114 = scmp.ne.s32.totalorder %s109, %s111
      %p115 = scmp.eq.s32.totalorder %s12, 0
      %p116 = por %p114, %p115
      %p117 = scmp.ne.s32.totalorder %s109, %s111
      %p118 = scmp.eq.s32.totalorder %s17, 1
      %p119 = por %p117, %p118
      %p120 = scmp.ne.s32.totalorder %s111, %s112
      %p121 = scmp.eq.s32.totalorder %s17, 0
      %p122 = por %p120, %p121
      %p123 = scmp.ne.s32.totalorder %s111, %s112
      %p124 = scmp.eq.s32.totalorder %s18, 1
      %p125 = por %p123, %p124
      %p127 = scmp.ne.s32.totalorder %s112, %s126
      %p128 = scmp.eq.s32.totalorder %s18, 0
      %p129 = por %p127, %p128
      %s131 = sadd.s32 %s130, 1
      %p134 = scmp.eq.s32.totalorder %s12, 1
      %p135 = scmp.ne.s32.totalorder %s130, %s132
      %p136 = scmp.eq.s32.totalorder %s12, 0
      %p137 = por %p135, %p136
      %p138 = scmp.ne.s32.totalorder %s130, %s132
      %p139 = scmp.eq.s32.totalorder %s17, 1
      %p140 = por %p138, %p139
      %p141 = scmp.ne.s32.totalorder %s132, %s133
      %p142 = scmp.eq.s32.totalorder %s17, 0
      %p143 = por %p141, %p142
      %p144 = scmp.ne.s32.totalorder %s132, %s133
      %p145 = scmp.eq.s32.totalorder %s18, 1
      %p146 = por %p144, %p145
      %p148 = scmp.ne.s32.totalorder %s133, %s147
      %p149 = scmp.eq.s32.totalorder %s18, 0
      %p150 = por %p148, %p149
      %p151 = scmp.le.s32.totalorder 1, %s12
      %p152 = scmp.lt.s32.totalorder %s12, 3
      %p153 = pnand %p151, %p152
      %p154 = pneg %p153
      // Predicated region
      $region9: #{image_classifier_forward.1} parent=5 // pred_check
        _
      $region10: #{image_classifier_forward.1} parent=5 // pred_check_branch
        %156 = sbr.rel (%p153) target = $region12
      $region11: #{image_classifier_forward.1} parent=5 // pred_region
        %s157 = ssub.s32 %s12, 1
        // Predicated region
        $region13: #{image_classifier_forward.1} parent=11 // pred_check
          %p158 = pneg %p59
        $region14: #{image_classifier_forward.1} parent=11 // pred_check_branch
          %160 = sbr.rel (%p158) target = $region16
        $region15: #{image_classifier_forward.1} parent=11 // pred_region
          _
        $region16: #{image_classifier_forward.1} parent=11 // pred_fallthru
          _
        // Predicated region
        $region17: #{image_classifier_forward.1} parent=11 // pred_check
          %p161 = pneg %p80
        $region18: #{image_classifier_forward.1} parent=11 // pred_check_branch
          %163 = sbr.rel (%p161) target = $region20
        $region19: #{image_classifier_forward.1} parent=11 // pred_region
          _
        $region20: #{image_classifier_forward.1} parent=11 // pred_fallthru
          _
        // Predicated region
        $region21: #{image_classifier_forward.1} parent=11 // pred_check
          %p164 = pneg %p101
        $region22: #{image_classifier_forward.1} parent=11 // pred_check_branch
          %166 = sbr.rel (%p164) target = $region24
        $region23: #{image_classifier_forward.1} parent=11 // pred_region
          _
        $region24: #{image_classifier_forward.1} parent=11 // pred_fallthru
          _
        // Predicated region
        $region25: #{image_classifier_forward.1} parent=11 // pred_check
          %p167 = pneg %p122
        $region26: #{image_classifier_forward.1} parent=11 // pred_check_branch
          %169 = sbr.rel (%p167) target = $region28
        $region27: #{image_classifier_forward.1} parent=11 // pred_region
          _
        $region28: #{image_classifier_forward.1} parent=11 // pred_fallthru
          _
      $region12: #{image_classifier_forward.1} parent=5 // pred_fallthru
        _
      %p170 = scmp.lt.s32.totalorder %s12, 2
      // Predicated region
      $region29: #{image_classifier_forward.1} parent=5 // pred_check
        %p171 = pneg %p170
      $region30: #{image_classifier_forward.1} parent=5 // pred_check_branch
        %173 = sbr.rel (%p171) target = $region32
      $region31: #{image_classifier_forward.1} parent=5 // pred_region
        // Predicated region
        $region33: #{image_classifier_forward.1} parent=31 // pred_check
          %p174 = pneg %p32
        $region34: #{image_classifier_forward.1} parent=31 // pred_check_branch
          %176 = sbr.rel (%p174) target = $region36
        $region35: #{image_classifier_forward.1} parent=31 // pred_region
          %s177 = sand.u32 %s22, 1
          %s178 = sand.u32 %s22, 1
          %s179 = smul.addr %s178, 128
          %s180 = scalar_lea.vmem [#allocation3], %s179
          %s181 = smul.u32 16, %s12
          %s182 = smul.addr %s181, 4
          %s183 = scalar_lea.vmem %s0, %s182
          // Predicated region
          $region37: #{image_classifier_forward.1} parent=35 // pred_check
            _
          $region38: #{image_classifier_forward.1} parent=35 // pred_check_branch
            %185 = sbr.rel (0) target = $region40
          $region39: #{image_classifier_forward.1} parent=35 // pred_region
            // Predicated region
            $region41: #{image_classifier_forward.1} parent=39 // pred_check
              _
            $region42: #{image_classifier_forward.1} parent=39 // pred_check_branch
              %187 = sbr.rel target = $region44
            $region43: #{image_classifier_forward.1} parent=39 // pred_region
              // Predicated region
              $region56: #{image_classifier_forward.1} parent=43 // pred_check
                _
              $region57: #{image_classifier_forward.1} parent=43 // pred_check_branch
                %264 = sbr.rel (0) target = $region59
              $region58: #{image_classifier_forward.1} parent=43 // pred_region
                loop: start=0, step=1, limit=1
                $region60: #{image_classifier_forward.1} parent=58 // loop_pre_header
                  _
                $region61: #{image_classifier_forward.1} parent=58 // loop_header
                  %s266 = sphi 0, %s270
                  %p267 = scmp.ge.s32.totalorder %s266, 1
                  %s271 = sphi %s183, %s183
                  %s272 = sphi %s180, %s180
                $region62: #{image_classifier_forward.1} parent=58 // loop_header_branch
                  %269 = sbr.rel (%p267) target = $region66
                $region63: #{image_classifier_forward.1} parent=58 // loop_body
                  _
                $region64: #{image_classifier_forward.1} parent=58 // loop_footer
                  %s270 = sadd.s32 1, %s266
                $region65: #{image_classifier_forward.1} parent=58 // loop_footer_branch
                  %265 = sbr.rel target = $region61
                $region66: #{image_classifier_forward.1} parent=58 // loop_exit
                  _
                loop: start=0, step=1, limit=1
                $region67: #{image_classifier_forward.1} parent=58 // loop_pre_header
                  _
                $region68: #{image_classifier_forward.1} parent=58 // loop_header
                  %s275 = sphi 0, %s279
                  %p276 = scmp.ge.s32.totalorder %s275, 1
                  %s280 = sphi %s183, %s183
                  %s281 = sphi %s180, %s180
                $region69: #{image_classifier_forward.1} parent=58 // loop_header_branch
                  %278 = sbr.rel (%p276) target = $region73
                $region70: #{image_classifier_forward.1} parent=58 // loop_body
                  %v282 = vld [vmem:[%s280] sm:$0xf]
                  %283 = vst [vmem:[%s281] sm:$0xf] %v282
                  %v284 = vld [vmem:[%s280 + $0x4] sm:$0xf]
                  %285 = vst [vmem:[%s281 + $0x4] sm:$0xf] %v284
                  %v286 = vld [vmem:[%s280 + $0x8] sm:$0xf]
                  %287 = vst [vmem:[%s281 + $0x8] sm:$0xf] %v286
                  %v288 = vld [vmem:[%s280 + $0xc] sm:$0xf]
                  %289 = vst [vmem:[%s281 + $0xc] sm:$0xf] %v288
                  %v290 = vld [vmem:[%s280 + $0x10] sm:$0xf]
                  %291 = vst [vmem:[%s281 + $0x10] sm:$0xf] %v290
                  %v292 = vld [vmem:[%s280 + $0x14] sm:$0xf]
                  %293 = vst [vmem:[%s281 + $0x14] sm:$0xf] %v292
                  %v294 = vld [vmem:[%s280 + $0x18] sm:$0xf]
                  %295 = vst [vmem:[%s281 + $0x18] sm:$0xf] %v294
                  %v296 = vld [vmem:[%s280 + $0x1c] sm:$0xf]
                  %297 = vst [vmem:[%s281 + $0x1c] sm:$0xf] %v296
                  %v298 = vld [vmem:[%s280 + $0x20] sm:$0xf]
                  %299 = vst [vmem:[%s281 + $0x20] sm:$0xf] %v298
                  %v300 = vld [vmem:[%s280 + $0x24] sm:$0xf]
                  %301 = vst [vmem:[%s281 + $0x24] sm:$0xf] %v300
                  %v302 = vld [vmem:[%s280 + $0x28] sm:$0xf]
                  %303 = vst [vmem:[%s281 + $0x28] sm:$0xf] %v302
                  %v304 = vld [vmem:[%s280 + $0x2c] sm:$0xf]
                  %305 = vst [vmem:[%s281 + $0x2c] sm:$0xf] %v304
                  %v306 = vld [vmem:[%s280 + $0x30] sm:$0xf]
                  %307 = vst [vmem:[%s281 + $0x30] sm:$0xf] %v306
                  %v308 = vld [vmem:[%s280 + $0x34] sm:$0xf]
                  %309 = vst [vmem:[%s281 + $0x34] sm:$0xf] %v308
                  %v310 = vld [vmem:[%s280 + $0x38] sm:$0xf]
                  %311 = vst [vmem:[%s281 + $0x38] sm:$0xf] %v310
                  %v312 = vld [vmem:[%s280 + $0x3c] sm:$0xf]
                  %313 = vst [vmem:[%s281 + $0x3c] sm:$0xf] %v312
                  %v314 = vld [vmem:[%s280 + $0x80] sm:$0xf]
                  %315 = vst [vmem:[%s281 + $0x40] sm:$0xf] %v314
                  %v316 = vld [vmem:[%s280 + $0x84] sm:$0xf]
                  %317 = vst [vmem:[%s281 + $0x44] sm:$0xf] %v316
                  %v318 = vld [vmem:[%s280 + $0x88] sm:$0xf]
                  %319 = vst [vmem:[%s281 + $0x48] sm:$0xf] %v318
                  %v320 = vld [vmem:[%s280 + $0x8c] sm:$0xf]
                  %321 = vst [vmem:[%s281 + $0x4c] sm:$0xf] %v320
                  %v322 = vld [vmem:[%s280 + $0x90] sm:$0xf]
                  %323 = vst [vmem:[%s281 + $0x50] sm:$0xf] %v322
                  %v324 = vld [vmem:[%s280 + $0x94] sm:$0xf]
                  %325 = vst [vmem:[%s281 + $0x54] sm:$0xf] %v324
                  %v326 = vld [vmem:[%s280 + $0x98] sm:$0xf]
                  %327 = vst [vmem:[%s281 + $0x58] sm:$0xf] %v326
                  %v328 = vld [vmem:[%s280 + $0x9c] sm:$0xf]
                  %329 = vst [vmem:[%s281 + $0x5c] sm:$0xf] %v328
                  %v330 = vld [vmem:[%s280 + $0xa0] sm:$0xf]
                  %331 = vst [vmem:[%s281 + $0x60] sm:$0xf] %v330
                  %v332 = vld [vmem:[%s280 + $0xa4] sm:$0xf]
                  %333 = vst [vmem:[%s281 + $0x64] sm:$0xf] %v332
                  %v334 = vld [vmem:[%s280 + $0xa8] sm:$0xf]
                  %335 = vst [vmem:[%s281 + $0x68] sm:$0xf] %v334
                  %v336 = vld [vmem:[%s280 + $0xac] sm:$0xf]
                  %337 = vst [vmem:[%s281 + $0x6c] sm:$0xf] %v336
                  %v338 = vld [vmem:[%s280 + $0xb0] sm:$0xf]
                  %339 = vst [vmem:[%s281 + $0x70] sm:$0xf] %v338
                  %v340 = vld [vmem:[%s280 + $0xb4] sm:$0xf]
                  %341 = vst [vmem:[%s281 + $0x74] sm:$0xf] %v340
                  %v342 = vld [vmem:[%s280 + $0xb8] sm:$0xf]
                  %343 = vst [vmem:[%s281 + $0x78] sm:$0xf] %v342
                  %v344 = vld [vmem:[%s280 + $0xbc] sm:$0xf]
                  %345 = vst [vmem:[%s281 + $0x7c] sm:$0xf] %v344
                $region71: #{image_classifier_forward.1} parent=58 // loop_footer
                  %s279 = sadd.s32 1, %s275
                $region72: #{image_classifier_forward.1} parent=58 // loop_footer_branch
                  %274 = sbr.rel target = $region68
                $region73: #{image_classifier_forward.1} parent=58 // loop_exit
                  _
              $region59: #{image_classifier_forward.1} parent=43 // pred_fallthru
                _
            $region44: #{image_classifier_forward.1} parent=39 // pred_fallthru
              _
            // Predicated region
            $region45: #{image_classifier_forward.1} parent=39 // pred_check
              _
            $region46: #{image_classifier_forward.1} parent=39 // pred_check_branch
              %189 = sbr.rel (0) target = $region48
            $region47: #{image_classifier_forward.1} parent=39 // pred_region
              loop: start=0, step=1, limit=1
              $region49: #{image_classifier_forward.1} parent=47 // loop_pre_header
                _
              $region50: #{image_classifier_forward.1} parent=47 // loop_header
                %s192 = sphi 0, %s196
                %p193 = scmp.ge.s32.totalorder %s192, 1
                %s197 = sphi %s183, %s183
                %s198 = sphi %s180, %s180
              $region51: #{image_classifier_forward.1} parent=47 // loop_header_branch
                %195 = sbr.rel (%p193) target = $region55
              $region52: #{image_classifier_forward.1} parent=47 // loop_body
                %v199 = vld [vmem:[%s197] sm:$0xf]
                %200 = vst [vmem:[%s198] sm:$0xf] %v199
                %v201 = vld [vmem:[%s197 + $0x4] sm:$0xf]
                %202 = vst [vmem:[%s198 + $0x4] sm:$0xf] %v201
                %v203 = vld [vmem:[%s197 + $0x8] sm:$0xf]
                %204 = vst [vmem:[%s198 + $0x8] sm:$0xf] %v203
                %v205 = vld [vmem:[%s197 + $0xc] sm:$0xf]
                %206 = vst [vmem:[%s198 + $0xc] sm:$0xf] %v205
                %v207 = vld [vmem:[%s197 + $0x10] sm:$0xf]
                %208 = vst [vmem:[%s198 + $0x10] sm:$0xf] %v207
                %v209 = vld [vmem:[%s197 + $0x14] sm:$0xf]
                %210 = vst [vmem:[%s198 + $0x14] sm:$0xf] %v209
                %v211 = vld [vmem:[%s197 + $0x18] sm:$0xf]
                %212 = vst [vmem:[%s198 + $0x18] sm:$0xf] %v211
                %v213 = vld [vmem:[%s197 + $0x1c] sm:$0xf]
                %214 = vst [vmem:[%s198 + $0x1c] sm:$0xf] %v213
                %v215 = vld [vmem:[%s197 + $0x20] sm:$0xf]
                %216 = vst [vmem:[%s198 + $0x20] sm:$0xf] %v215
                %v217 = vld [vmem:[%s197 + $0x24] sm:$0xf]
                %218 = vst [vmem:[%s198 + $0x24] sm:$0xf] %v217
                %v219 = vld [vmem:[%s197 + $0x28] sm:$0xf]
                %220 = vst [vmem:[%s198 + $0x28] sm:$0xf] %v219
                %v221 = vld [vmem:[%s197 + $0x2c] sm:$0xf]
                %222 = vst [vmem:[%s198 + $0x2c] sm:$0xf] %v221
                %v223 = vld [vmem:[%s197 + $0x30] sm:$0xf]
                %224 = vst [vmem:[%s198 + $0x30] sm:$0xf] %v223
                %v225 = vld [vmem:[%s197 + $0x34] sm:$0xf]
                %226 = vst [vmem:[%s198 + $0x34] sm:$0xf] %v225
                %v227 = vld [vmem:[%s197 + $0x38] sm:$0xf]
                %228 = vst [vmem:[%s198 + $0x38] sm:$0xf] %v227
                %v229 = vld [vmem:[%s197 + $0x3c] sm:$0xf]
                %230 = vst [vmem:[%s198 + $0x3c] sm:$0xf] %v229
                %v231 = vld [vmem:[%s197 + $0x80] sm:$0xf]
                %232 = vst [vmem:[%s198 + $0x40] sm:$0xf] %v231
                %v233 = vld [vmem:[%s197 + $0x84] sm:$0xf]
                %234 = vst [vmem:[%s198 + $0x44] sm:$0xf] %v233
                %v235 = vld [vmem:[%s197 + $0x88] sm:$0xf]
                %236 = vst [vmem:[%s198 + $0x48] sm:$0xf] %v235
                %v237 = vld [vmem:[%s197 + $0x8c] sm:$0xf]
                %238 = vst [vmem:[%s198 + $0x4c] sm:$0xf] %v237
                %v239 = vld [vmem:[%s197 + $0x90] sm:$0xf]
                %240 = vst [vmem:[%s198 + $0x50] sm:$0xf] %v239
                %v241 = vld [vmem:[%s197 + $0x94] sm:$0xf]
                %242 = vst [vmem:[%s198 + $0x54] sm:$0xf] %v241
                %v243 = vld [vmem:[%s197 + $0x98] sm:$0xf]
                %244 = vst [vmem:[%s198 + $0x58] sm:$0xf] %v243
                %v245 = vld [vmem:[%s197 + $0x9c] sm:$0xf]
                %246 = vst [vmem:[%s198 + $0x5c] sm:$0xf] %v245
                %v247 = vld [vmem:[%s197 + $0xa0] sm:$0xf]
                %248 = vst [vmem:[%s198 + $0x60] sm:$0xf] %v247
                %v249 = vld [vmem:[%s197 + $0xa4] sm:$0xf]
                %250 = vst [vmem:[%s198 + $0x64] sm:$0xf] %v249
                %v251 = vld [vmem:[%s197 + $0xa8] sm:$0xf]
                %252 = vst [vmem:[%s198 + $0x68] sm:$0xf] %v251
                %v253 = vld [vmem:[%s197 + $0xac] sm:$0xf]
                %254 = vst [vmem:[%s198 + $0x6c] sm:$0xf] %v253
                %v255 = vld [vmem:[%s197 + $0xb0] sm:$0xf]
                %256 = vst [vmem:[%s198 + $0x70] sm:$0xf] %v255
                %v257 = vld [vmem:[%s197 + $0xb4] sm:$0xf]
                %258 = vst [vmem:[%s198 + $0x74] sm:$0xf] %v257
                %v259 = vld [vmem:[%s197 + $0xb8] sm:$0xf]
                %260 = vst [vmem:[%s198 + $0x78] sm:$0xf] %v259
                %v261 = vld [vmem:[%s197 + $0xbc] sm:$0xf]
                %262 = vst [vmem:[%s198 + $0x7c] sm:$0xf] %v261
              $region53: #{image_classifier_forward.1} parent=47 // loop_footer
                %s196 = sadd.s32 1, %s192
              $region54: #{image_classifier_forward.1} parent=47 // loop_footer_branch
                %191 = sbr.rel target = $region50
              $region55: #{image_classifier_forward.1} parent=47 // loop_exit
                _
            $region48: #{image_classifier_forward.1} parent=39 // pred_fallthru
              _
          $region40: #{image_classifier_forward.1} parent=35 // pred_fallthru
            _
          %346 = vnop
        $region36: #{image_classifier_forward.1} parent=31 // pred_fallthru
          _
      $region32: #{image_classifier_forward.1} parent=5 // pred_fallthru
        _
      %p347 = scmp.le.s32.totalorder 1, %s12
      %p348 = scmp.lt.s32.totalorder %s12, 3
      %p349 = pnand %p347, %p348
      %p350 = pneg %p349
      // Predicated region
      $region74: #{image_classifier_forward.1} parent=5 // pred_check
        _
      $region75: #{image_classifier_forward.1} parent=5 // pred_check_branch
        %352 = sbr.rel (%p349) target = $region77
      $region76: #{image_classifier_forward.1} parent=5 // pred_region
        %s353 = ssub.s32 %s12, 1
        %s354 = sand.u32 %s25, 1
        %s355 = sand.u32 %s25, 1
        %s356 = smul.addr %s355, 128
        %s357 = scalar_lea.vmem [#allocation3], %s356
        // Predicated region
        $region78: #{image_classifier_forward.1} parent=76 // pred_check
          %p358 = pneg %p38
        $region79: #{image_classifier_forward.1} parent=76 // pred_check_branch
          %360 = sbr.rel (%p358) target = $region81
        $region80: #{image_classifier_forward.1} parent=76 // pred_region
          _
        $region81: #{image_classifier_forward.1} parent=76 // pred_fallthru
          _
        %s361 = sand.u32 %s25, 1
        %s362 = sand.u32 %s25, 1
        %s363 = smul.addr %s362, 128
        %s364 = scalar_lea.vmem [#allocation3], %s363
        %p365 = pneg %p38
        %p366 = pneg %p35
        %p367 = pneg %p59
        %p368 = pneg %p56
        %p369 = pneg %p80
        %p370 = pneg %p77
        %p371 = pneg %p101
        %p372 = pneg %p98
        %p373 = pneg %p122
        %p374 = pneg %p119
        %p375 = pneg %p143
        %p376 = pneg %p140
        %s377 = smul.u32 16, %s17
        %p379 = scmp.eq.s32.totalorder %s17, 0
        // Predicated region
        $region82: #{image_classifier_forward.1} parent=76 // pred_check
          %p380 = pneg %p379
        $region83: #{image_classifier_forward.1} parent=76 // pred_check_branch
          %382 = sbr.rel (%p380) target = $region85
        $region84: #{image_classifier_forward.1} parent=76 // pred_region
          %383 = vst [vmem:[#allocation2] sm:$0x3] 0.0
        $region85: #{image_classifier_forward.1} parent=76 // pred_fallthru
          _
        %v384 = vld [vmem:[%s357] sm:$0xf]
        %v385 = vld [vmem:[%s357 + $0x4] sm:$0xf]
        %v386 = vld [vmem:[%s357 + $0x8] sm:$0xf]
        %v387 = vld [vmem:[%s357 + $0xc] sm:$0xf]
        %v388 = vld [vmem:[%s357 + $0x10] sm:$0xf]
        %v389 = vld [vmem:[%s357 + $0x14] sm:$0xf]
        %v390 = vld [vmem:[%s357 + $0x18] sm:$0xf]
        %v391 = vld [vmem:[%s357 + $0x1c] sm:$0xf]
        %v392 = vld [vmem:[%s357 + $0x20] sm:$0xf]
        %v393 = vld [vmem:[%s357 + $0x24] sm:$0xf]
        %v394 = vld [vmem:[%s357 + $0x28] sm:$0xf]
        %v395 = vld [vmem:[%s357 + $0x2c] sm:$0xf]
        %v396 = vld [vmem:[%s357 + $0x30] sm:$0xf]
        %v397 = vld [vmem:[%s357 + $0x34] sm:$0xf]
        %v398 = vld [vmem:[%s357 + $0x38] sm:$0xf]
        %v399 = vld [vmem:[%s357 + $0x3c] sm:$0xf]
        %v400 = vld [vmem:[%s357 + $0x40] sm:$0xf]
        %v401 = vld [vmem:[%s357 + $0x44] sm:$0xf]
        %v402 = vld [vmem:[%s357 + $0x48] sm:$0xf]
        %v403 = vld [vmem:[%s357 + $0x4c] sm:$0xf]
        %v404 = vld [vmem:[%s357 + $0x50] sm:$0xf]
        %v405 = vld [vmem:[%s357 + $0x54] sm:$0xf]
        %v406 = vld [vmem:[%s357 + $0x58] sm:$0xf]
        %v407 = vld [vmem:[%s357 + $0x5c] sm:$0xf]
        %v408 = vld [vmem:[%s357 + $0x60] sm:$0xf]
        %v409 = vld [vmem:[%s357 + $0x64] sm:$0xf]
        %v410 = vld [vmem:[%s357 + $0x68] sm:$0xf]
        %v411 = vld [vmem:[%s357 + $0x6c] sm:$0xf]
        %v412 = vld [vmem:[%s357 + $0x70] sm:$0xf]
        %v413 = vld [vmem:[%s357 + $0x74] sm:$0xf]
        %v414 = vld [vmem:[%s357 + $0x78] sm:$0xf]
        %v415 = vld [vmem:[%s357 + $0x7c] sm:$0xf]
        %v416 = vld [vmem:[%s1] sm:$0xf]
        %v417 = vld [vmem:[%s1 + $0x4] sm:$0xf]
        %v418 = vld [vmem:[%s1 + $0x8] sm:$0xf]
        %v419 = vld [vmem:[%s1 + $0xc] sm:$0xf]
        %v420 = vld [vmem:[%s1 + $0x10] sm:$0xf]
        %v421 = vld [vmem:[%s1 + $0x14] sm:$0xf]
        %v422 = vld [vmem:[%s1 + $0x18] sm:$0xf]
        %v423 = vld [vmem:[%s1 + $0x1c] sm:$0xf]
        %v424 = vld [vmem:[%s1 + $0x20] sm:$0xf]
        %v425 = vld [vmem:[%s1 + $0x24] sm:$0xf]
        %v426 = vld [vmem:[%s1 + $0x28] sm:$0xf]
        %v427 = vld [vmem:[%s1 + $0x2c] sm:$0xf]
        %v428 = vld [vmem:[%s1 + $0x30] sm:$0xf]
        %v429 = vld [vmem:[%s1 + $0x34] sm:$0xf]
        %v430 = vld [vmem:[%s1 + $0x38] sm:$0xf]
        %v431 = vld [vmem:[%s1 + $0x3c] sm:$0xf]
        %v432 = vld [vmem:[%s2] sm:$0x1]
        %v434 = vlaneseq
        %v435 = vshrl.u32 %v434, 7
        %v436 = vsub.s32 0, %v435
        %v437 = vrot.slane %v432, %v436
        %v471 = vunpack.c.l.b16 %v384
        %v472 = vunpack.c.l.b16 %v385
        %v473 = vunpack.c.l.b16 %v386
        %v474 = vunpack.c.l.b16 %v387
        %v475 = vunpack.c.l.b16 %v388
        %v476 = vunpack.c.l.b16 %v389
        %v477 = vunpack.c.l.b16 %v390
        %v478 = vunpack.c.l.b16 %v391
        %v479 = vunpack.c.l.b16 %v392
        %v480 = vunpack.c.l.b16 %v393
        %v481 = vunpack.c.l.b16 %v394
        %v482 = vunpack.c.l.b16 %v395
        %v483 = vunpack.c.l.b16 %v396
        %v484 = vunpack.c.l.b16 %v397
        %v485 = vunpack.c.l.b16 %v398
        %v486 = vunpack.c.l.b16 %v399
        %v487 = vunpack.c.l.b16 %v400
        %v488 = vunpack.c.l.b16 %v401
        %v489 = vunpack.c.l.b16 %v402
        %v490 = vunpack.c.l.b16 %v403
        %v491 = vunpack.c.l.b16 %v404
        %v492 = vunpack.c.l.b16 %v405
        %v493 = vunpack.c.l.b16 %v406
        %v494 = vunpack.c.l.b16 %v407
        %v495 = vunpack.c.l.b16 %v408
        %v496 = vunpack.c.l.b16 %v409
        %v497 = vunpack.c.l.b16 %v410
        %v498 = vunpack.c.l.b16 %v411
        %v499 = vunpack.c.l.b16 %v412
        %v500 = vunpack.c.l.b16 %v413
        %v501 = vunpack.c.l.b16 %v414
        %v502 = vunpack.c.l.b16 %v415
        %v503 = vpack.c.b16 %v472, %v471
        %v504 = vpack.c.b16 %v474, %v473
        %v505 = vpack.c.b16 %v476, %v475
        %v506 = vpack.c.b16 %v478, %v477
        %v507 = vpack.c.b16 %v480, %v479
        %v508 = vpack.c.b16 %v482, %v481
        %v509 = vpack.c.b16 %v484, %v483
        %v510 = vpack.c.b16 %v486, %v485
        %v511 = vpack.c.b16 %v488, %v487
        %v512 = vpack.c.b16 %v490, %v489
        %v513 = vpack.c.b16 %v492, %v491
        %v514 = vpack.c.b16 %v494, %v493
        %v515 = vpack.c.b16 %v496, %v495
        %v516 = vpack.c.b16 %v498, %v497
        %v517 = vpack.c.b16 %v500, %v499
        %v518 = vpack.c.b16 %v502, %v501
        %v551 = vunpack.c.l.b16 %v416
        %v552 = vunpack.c.l.b16 %v417
        %v553 = vunpack.c.l.b16 %v418
        %v554 = vunpack.c.l.b16 %v419
        %v555 = vunpack.c.l.b16 %v420
        %v556 = vunpack.c.l.b16 %v421
        %v557 = vunpack.c.l.b16 %v422
        %v558 = vunpack.c.l.b16 %v423
        %v559 = vunpack.c.l.b16 %v424
        %v560 = vunpack.c.l.b16 %v425
        %v561 = vunpack.c.l.b16 %v426
        %v562 = vunpack.c.l.b16 %v427
        %v563 = vunpack.c.l.b16 %v428
        %v564 = vunpack.c.l.b16 %v429
        %v565 = vunpack.c.l.b16 %v430
        %v566 = vunpack.c.l.b16 %v431
        %v567 = vpack.c.b16 %v552, %v551
        %v568 = vpack.c.b16 %v554, %v553
        %v569 = vpack.c.b16 %v556, %v555
        %v570 = vpack.c.b16 %v558, %v557
        %v571 = vpack.c.b16 %v560, %v559
        %v572 = vpack.c.b16 %v562, %v561
        %v573 = vpack.c.b16 %v564, %v563
        %v574 = vpack.c.b16 %v566, %v565
        %583 = vmatprep.subr.bf16.mxu0 0
        %584 = vmatpush1.bf16.msra.mxu0 %v567
        %585 = vmatprep.subr.bf16.mxu0 0
        %586 = vmatpush1.bf16.msra.mxu0 %v568
        %587 = vmatprep.subr.bf16.mxu0 0
        %588 = vmatpush1.bf16.msra.mxu0 %v569
        %589 = vmatprep.subr.bf16.mxu0 0
        %590 = vmatpush1.bf16.msra.mxu0 %v570
        %591 = vmatprep.subr.bf16.mxu0 0
        %592 = vmatpush1.bf16.msra.mxu0 %v571
        %593 = vmatprep.subr.bf16.mxu0 0
        %594 = vmatpush1.bf16.msra.mxu0 %v572
        %595 = vmatprep.subr.bf16.mxu0 0
        %596 = vmatpush1.bf16.msra.mxu0 %v573
        %597 = vmatprep.subr.bf16.mxu0 0
        %598 = vmatpush1.bf16.msra.mxu0 %v574
        %599 = vmatprep.subr.bf16.mxu0 0
        %600 = vmatpush1.bf16.msra.mxu0 0
        %601 = vmatprep.subr.bf16.mxu0 0
        %602 = vmatpush1.bf16.msra.mxu0 0
        %603 = vmatprep.subr.bf16.mxu0 0
        %604 = vmatpush1.bf16.msra.mxu0 0
        %605 = vmatprep.subr.bf16.mxu0 0
        %606 = vmatpush1.bf16.msra.mxu0 0
        %607 = vmatprep.subr.bf16.mxu0 0
        %608 = vmatpush1.bf16.msra.mxu0 0
        %609 = vmatprep.subr.bf16.mxu0 0
        %610 = vmatpush1.bf16.msra.mxu0 0
        %611 = vmatprep.subr.bf16.mxu0 0
        %612 = vmatpush1.bf16.msra.mxu0 0
        %613 = vmatprep.subr.bf16.mxu0 0
        %614 = vmatpush1.bf16.msra.mxu0 0
        %615 = vmatprep.mubr.bf16.mxu0 0
        %616 = vmatmul.mubr.bf16.gmra.mrb[0].mxu0 %v503
        %v617 = vpop.f32.mrb[0].mxu0
        %v618 = vadd.f32 %v437, %v617
        %v619 = vpop.f32.mrb[0].mxu0
        %v620 = vpop.f32.mrb[0].mxu0
        %v621 = vadd.f32 %v437, %v620
        %v622 = vpop.f32.mrb[0].mxu0
        %623 = vmatprep.mubr.bf16.mxu0 0
        %624 = vmatmul.mubr.bf16.gmra.mrb[0].mxu0 %v504
        %v625 = vpop.f32.mrb[0].mxu0
        %v626 = vadd.f32 %v437, %v625
        %v627 = vpop.f32.mrb[0].mxu0
        %v628 = vpop.f32.mrb[0].mxu0
        %v629 = vadd.f32 %v437, %v628
        %v630 = vpop.f32.mrb[0].mxu0
        %631 = vmatprep.mubr.bf16.mxu0 0
        %632 = vmatmul.mubr.bf16.gmra.mrb[0].mxu0 %v505
        %v633 = vpop.f32.mrb[0].mxu0
        %v634 = vadd.f32 %v437, %v633
        %v635 = vpop.f32.mrb[0].mxu0
        %v636 = vpop.f32.mrb[0].mxu0
        %v637 = vadd.f32 %v437, %v636
        %v638 = vpop.f32.mrb[0].mxu0
        %639 = vmatprep.mubr.bf16.mxu0 0
        %640 = vmatmul.mubr.bf16.gmra.mrb[0].mxu0 %v506
        %v641 = vpop.f32.mrb[0].mxu0
        %v642 = vadd.f32 %v437, %v641
        %v643 = vpop.f32.mrb[0].mxu0
        %v644 = vpop.f32.mrb[0].mxu0
        %v645 = vadd.f32 %v437, %v644
        %v646 = vpop.f32.mrb[0].mxu0
        %647 = vmatprep.mubr.bf16.mxu0 0
        %648 = vmatmul.mubr.bf16.gmra.mrb[0].mxu0 %v507
        %v649 = vpop.f32.mrb[0].mxu0
        %v650 = vadd.f32 %v437, %v649
        %v651 = vpop.f32.mrb[0].mxu0
        %v652 = vpop.f32.mrb[0].mxu0
        %v653 = vadd.f32 %v437, %v652
        %v654 = vpop.f32.mrb[0].mxu0
        %655 = vmatprep.mubr.bf16.mxu0 0
        %656 = vmatmul.mubr.bf16.gmra.mrb[0].mxu0 %v508
        %v657 = vpop.f32.mrb[0].mxu0
        %v658 = vadd.f32 %v437, %v657
        %v659 = vpop.f32.mrb[0].mxu0
        %v660 = vpop.f32.mrb[0].mxu0
        %v661 = vadd.f32 %v437, %v660
        %v662 = vpop.f32.mrb[0].mxu0
        %663 = vmatprep.mubr.bf16.mxu0 0
        %664 = vmatmul.mubr.bf16.gmra.mrb[0].mxu0 %v509
        %v665 = vpop.f32.mrb[0].mxu0
        %v666 = vadd.f32 %v437, %v665
        %v667 = vpop.f32.mrb[0].mxu0
        %v668 = vpop.f32.mrb[0].mxu0
        %v669 = vadd.f32 %v437, %v668
        %v670 = vpop.f32.mrb[0].mxu0
        %671 = vmatprep.mubr.bf16.mxu0 0
        %672 = vmatmul.mubr.bf16.gmra.mrb[0].mxu0 %v510
        %v673 = vpop.f32.mrb[0].mxu0
        %v674 = vadd.f32 %v437, %v673
        %v675 = vpop.f32.mrb[0].mxu0
        %v676 = vpop.f32.mrb[0].mxu0
        %v677 = vadd.f32 %v437, %v676
        %v678 = vpop.f32.mrb[0].mxu0
        %679 = vmatprep.mubr.bf16.mxu0 0
        %680 = vmatmul.mubr.bf16.gmra.mrb[0].mxu0 %v511
        %v681 = vpop.f32.mrb[0].mxu0
        %v682 = vadd.f32 %v437, %v681
        %v683 = vpop.f32.mrb[0].mxu0
        %v684 = vpop.f32.mrb[0].mxu0
        %v685 = vadd.f32 %v437, %v684
        %v686 = vpop.f32.mrb[0].mxu0
        %687 = vmatprep.mubr.bf16.mxu0 0
        %688 = vmatmul.mubr.bf16.gmra.mrb[0].mxu0 %v512
        %v689 = vpop.f32.mrb[0].mxu0
        %v690 = vadd.f32 %v437, %v689
        %v691 = vpop.f32.mrb[0].mxu0
        %v692 = vpop.f32.mrb[0].mxu0
        %v693 = vadd.f32 %v437, %v692
        %v694 = vpop.f32.mrb[0].mxu0
        %695 = vmatprep.mubr.bf16.mxu0 0
        %696 = vmatmul.mubr.bf16.gmra.mrb[0].mxu0 %v513
        %v697 = vpop.f32.mrb[0].mxu0
        %v698 = vadd.f32 %v437, %v697
        %v699 = vpop.f32.mrb[0].mxu0
        %v700 = vpop.f32.mrb[0].mxu0
        %v701 = vadd.f32 %v437, %v700
        %v702 = vpop.f32.mrb[0].mxu0
        %703 = vmatprep.mubr.bf16.mxu0 0
        %704 = vmatmul.mubr.bf16.gmra.mrb[0].mxu0 %v514
        %v705 = vpop.f32.mrb[0].mxu0
        %v706 = vadd.f32 %v437, %v705
        %v707 = vpop.f32.mrb[0].mxu0
        %v708 = vpop.f32.mrb[0].mxu0
        %v709 = vadd.f32 %v437, %v708
        %v710 = vpop.f32.mrb[0].mxu0
        %711 = vmatprep.mubr.bf16.mxu0 0
        %712 = vmatmul.mubr.bf16.gmra.mrb[0].mxu0 %v515
        %v713 = vpop.f32.mrb[0].mxu0
        %v714 = vadd.f32 %v437, %v713
        %v715 = vpop.f32.mrb[0].mxu0
        %v716 = vpop.f32.mrb[0].mxu0
        %v717 = vadd.f32 %v437, %v716
        %v718 = vpop.f32.mrb[0].mxu0
        %719 = vmatprep.mubr.bf16.mxu0 0
        %720 = vmatmul.mubr.bf16.gmra.mrb[0].mxu0 %v516
        %v721 = vpop.f32.mrb[0].mxu0
        %v722 = vadd.f32 %v437, %v721
        %v723 = vpop.f32.mrb[0].mxu0
        %v724 = vpop.f32.mrb[0].mxu0
        %v725 = vadd.f32 %v437, %v724
        %v726 = vpop.f32.mrb[0].mxu0
        %727 = vmatprep.mubr.bf16.mxu0 0
        %728 = vmatmul.mubr.bf16.gmra.mrb[0].mxu0 %v517
        %v729 = vpop.f32.mrb[0].mxu0
        %v730 = vadd.f32 %v437, %v729
        %v731 = vpop.f32.mrb[0].mxu0
        %v732 = vpop.f32.mrb[0].mxu0
        %v733 = vadd.f32 %v437, %v732
        %v734 = vpop.f32.mrb[0].mxu0
        %735 = vmatprep.mubr.bf16.mxu0 0
        %736 = vmatmul.mubr.bf16.gmra.mrb[0].mxu0 %v518
        %v737 = vpop.f32.mrb[0].mxu0
        %v738 = vadd.f32 %v437, %v737
        %v739 = vpop.f32.mrb[0].mxu0
        %v740 = vpop.f32.mrb[0].mxu0
        %v741 = vadd.f32 %v437, %v740
        %v742 = vpop.f32.mrb[0].mxu0
        %743 = vdwg.mxu0
        %v744 = vmax.f32 %v618, 0.0
        %v745 = vmax.f32 %v621, 0.0
        %v746 = vmax.f32 %v626, 0.0
        %v747 = vmax.f32 %v629, 0.0
        %v748 = vmax.f32 %v634, 0.0
        %v749 = vmax.f32 %v637, 0.0
        %v750 = vmax.f32 %v642, 0.0
        %v751 = vmax.f32 %v645, 0.0
        %v752 = vmax.f32 %v650, 0.0
        %v753 = vmax.f32 %v653, 0.0
        %v754 = vmax.f32 %v658, 0.0
        %v755 = vmax.f32 %v661, 0.0
        %v756 = vmax.f32 %v666, 0.0
        %v757 = vmax.f32 %v669, 0.0
        %v758 = vmax.f32 %v674, 0.0
        %v759 = vmax.f32 %v677, 0.0
        %v760 = vmax.f32 %v682, 0.0
        %v761 = vmax.f32 %v685, 0.0
        %v762 = vmax.f32 %v690, 0.0
        %v763 = vmax.f32 %v693, 0.0
        %v764 = vmax.f32 %v698, 0.0
        %v765 = vmax.f32 %v701, 0.0
        %v766 = vmax.f32 %v706, 0.0
        %v767 = vmax.f32 %v709, 0.0
        %v768 = vmax.f32 %v714, 0.0
        %v769 = vmax.f32 %v717, 0.0
        %v770 = vmax.f32 %v722, 0.0
        %v771 = vmax.f32 %v725, 0.0
        %v772 = vmax.f32 %v730, 0.0
        %v773 = vmax.f32 %v733, 0.0
        %v774 = vmax.f32 %v738, 0.0
        %v775 = vmax.f32 %v741, 0.0
        %v776 = vld [vmem:[#allocation2] sm:$0x3]
        %v777 = vadd.f32 %v744, %v745
        %v778 = vadd.f32 %v777, %v746
        %v779 = vadd.f32 %v778, %v747
        %v780 = vadd.f32 %v779, %v748
        %v781 = vadd.f32 %v780, %v749
        %v782 = vadd.f32 %v781, %v750
        %v783 = vadd.f32 %v782, %v751
        %v784 = vadd.f32 %v783, %v752
        %v785 = vadd.f32 %v784, %v753
        %v786 = vadd.f32 %v785, %v754
        %v787 = vadd.f32 %v786, %v755
        %v788 = vadd.f32 %v787, %v756
        %v789 = vadd.f32 %v788, %v757
        %v790 = vadd.f32 %v789, %v758
        %v791 = vadd.f32 %v790, %v759
        %v792 = vrot.slane %v791, 4
        %v793 = vadd.f32 %v791, %v792
        %v794 = vrot.slane %v793, 2
        %v795 = vadd.f32 %v793, %v794
        %v796 = vrot.slane %v795, 1
        %v797 = vadd.f32 %v795, %v796
        %v798 = vadd.f32 %v760, %v761
        %v799 = vadd.f32 %v798, %v762
        %v800 = vadd.f32 %v799, %v763
        %v801 = vadd.f32 %v800, %v764
        %v802 = vadd.f32 %v801, %v765
        %v803 = vadd.f32 %v802, %v766
        %v804 = vadd.f32 %v803, %v767
        %v805 = vadd.f32 %v804, %v768
        %v806 = vadd.f32 %v805, %v769
        %v807 = vadd.f32 %v806, %v770
        %v808 = vadd.f32 %v807, %v771
        %v809 = vadd.f32 %v808, %v772
        %v810 = vadd.f32 %v809, %v773
        %v811 = vadd.f32 %v810, %v774
        %v812 = vadd.f32 %v811, %v775
        %v813 = vrot.slane %v812, 4
        %v814 = vadd.f32 %v812, %v813
        %v815 = vrot.slane %v814, 2
        %v816 = vadd.f32 %v814, %v815
        %v817 = vrot.slane %v816, 1
        %v818 = vadd.f32 %v816, %v817
        %vm821 = vcmask 1041409
        %v822 = vsel %vm821, %v818, %v797
        %v824 = vadd.f32 %v776, %v822
        %825 = vst [vmem:[#allocation2] sm:$0x3] %v824
        %p826 = scmp.eq.s32.totalorder %s17, 1
        // Predicated region
        $region86: #{image_classifier_forward.1} parent=76 // pred_check
          %p827 = pneg %p826
        $region87: #{image_classifier_forward.1} parent=76 // pred_check_branch
          %829 = sbr.rel (%p827) target = $region89
        $region88: #{image_classifier_forward.1} parent=76 // pred_region
          %v830 = vld [vmem:[#allocation2] sm:$0x3]
          %v831 = vmul.f32 %v830, 0.00390625
          %v832 = vld [vmem:[%s3] sm:$0xff]
          %v833 = vld [vmem:[%s3 + $0x8] sm:$0xff]
          %v834 = vld [vmem:[%s3 + $0x10] sm:$0xff]
          %v835 = vld [vmem:[%s3 + $0x18] sm:$0xff]
          %v836 = vld [vmem:[%s3 + $0x20] sm:$0xff]
          %v837 = vld [vmem:[%s3 + $0x28] sm:$0xff]
          %v838 = vld [vmem:[%s3 + $0x30] sm:$0xff]
          %v839 = vld [vmem:[%s3 + $0x38] sm:$0xff]
          %v840 = vld [vmem:[%s3 + $0x40] sm:$0xff]
          %v841 = vld [vmem:[%s3 + $0x48] sm:$0xff]
          %v842 = vld [vmem:[%s3 + $0x50] sm:$0xff]
          %v843 = vld [vmem:[%s3 + $0x58] sm:$0xff]
          %v844 = vld [vmem:[%s3 + $0x60] sm:$0xff]
          %v845 = vld [vmem:[%s3 + $0x68] sm:$0xff]
          %v846 = vld [vmem:[%s3 + $0x70] sm:$0xff]
          %v847 = vld [vmem:[%s3 + $0x78] sm:$0xff]
          %v848 = vld [vmem:[%s4] sm:$0x1]
          %v850 = vlaneseq
          %v851 = vshrl.u32 %v850, 7
          %v852 = vsub.s32 0, %v851
          %v853 = vrot.slane %v848, %v852
          %855 = vmatprep.subr.mxu0 0.0
          %856 = vmatpush1.msra.mxu0 %v832
          %857 = vmatprep.subr.mxu0 0.0
          %858 = vmatpush1.msra.mxu0 %v833
          %859 = vmatprep.subr.mxu0 0.0
          %860 = vmatpush1.msra.mxu0 %v834
          %861 = vmatprep.subr.mxu0 0.0
          %862 = vmatpush1.msra.mxu0 %v835
          %863 = vmatprep.subr.mxu0 0.0
          %864 = vmatpush1.msra.mxu0 %v836
          %865 = vmatprep.subr.mxu0 0.0
          %866 = vmatpush1.msra.mxu0 %v837
          %867 = vmatprep.subr.mxu0 0.0
          %868 = vmatpush1.msra.mxu0 %v838
          %869 = vmatprep.subr.mxu0 0.0
          %870 = vmatpush1.msra.mxu0 %v839
          %871 = vmatprep.subr.mxu0 0.0
          %872 = vmatpush1.msra.mxu0 %v840
          %873 = vmatprep.subr.mxu0 0.0
          %874 = vmatpush1.msra.mxu0 %v841
          %875 = vmatprep.subr.mxu0 0.0
          %876 = vmatpush1.msra.mxu0 %v842
          %877 = vmatprep.subr.mxu0 0.0
          %878 = vmatpush1.msra.mxu0 %v843
          %879 = vmatprep.subr.mxu0 0.0
          %880 = vmatpush1.msra.mxu0 %v844
          %881 = vmatprep.subr.mxu0 0.0
          %882 = vmatpush1.msra.mxu0 %v845
          %883 = vmatprep.subr.mxu0 0.0
          %884 = vmatpush1.msra.mxu0 %v846
          %885 = vmatprep.subr.mxu0 0.0
          %886 = vmatpush1.msra.mxu0 %v847
          %887 = vmatprep.subr.mxu0 0.0
          %888 = vmatpush1.msra.mxu0 0.0
          %889 = vmatprep.subr.mxu0 0.0
          %890 = vmatpush1.msra.mxu0 0.0
          %891 = vmatprep.subr.mxu0 0.0
          %892 = vmatpush1.msra.mxu0 0.0
          %893 = vmatprep.subr.mxu0 0.0
          %894 = vmatpush1.msra.mxu0 0.0
          %895 = vmatprep.subr.mxu0 0.0
          %896 = vmatpush1.msra.mxu0 0.0
          %897 = vmatprep.subr.mxu0 0.0
          %898 = vmatpush1.msra.mxu0 0.0
          %899 = vmatprep.subr.mxu0 0.0
          %900 = vmatpush1.msra.mxu0 0.0
          %901 = vmatprep.subr.mxu0 0.0
          %902 = vmatpush1.msra.mxu0 0.0
          %903 = vmatprep.subr.mxu0 0.0
          %904 = vmatpush1.msra.mxu0 0.0
          %905 = vmatprep.subr.mxu0 0.0
          %906 = vmatpush1.msra.mxu0 0.0
          %907 = vmatprep.subr.mxu0 0.0
          %908 = vmatpush1.msra.mxu0 0.0
          %909 = vmatprep.subr.mxu0 0.0
          %910 = vmatpush1.msra.mxu0 0.0
          %911 = vmatprep.subr.mxu0 0.0
          %912 = vmatpush1.msra.mxu0 0.0
          %913 = vmatprep.subr.mxu0 0.0
          %914 = vmatpush1.msra.mxu0 0.0
          %915 = vmatprep.subr.mxu0 0.0
          %916 = vmatpush1.msra.mxu0 0.0
          %917 = vmatprep.subr.mxu0 0.0
          %918 = vmatpush1.msra.mxu0 0.0
          %919 = vmatprep.mubr.f32.mxu0 0.0
          %920 = vmatmul.mubr.f32.gmra.mrb[0].mxu0 %v831
          %v921 = vpop.f32.mrb[0].mxu0
          %v922 = vadd.f32 %v853, %v921
          %v923 = vpop.f32.mrb[0].mxu0
          %924 = vdwg.mxu0
          %925 = vst [vmem:[#allocation4] sm:$0x3] %v922
        $region89: #{image_classifier_forward.1} parent=76 // pred_fallthru
          _
        // Predicated region
        $region90: #{image_classifier_forward.1} parent=76 // pred_check
          %p926 = pneg %p140
        $region91: #{image_classifier_forward.1} parent=76 // pred_check_branch
          %928 = sbr.rel (%p926) target = $region93
        $region92: #{image_classifier_forward.1} parent=76 // pred_region
          %s930 = ssub.s32 32, 32
          %931 = vsyncadd [#allocation5], %s930
          %s933 = sshll.u32 [#allocation4], 4
          %s934 = int_to_ptr.vmem [resolvable:$true] %s933
          %936 = dma.vmem_to_hbm [thread:$0]  %s934, 32, %s5, [#allocation5]
        $region93: #{image_classifier_forward.1} parent=76 // pred_fallthru
          _
        // Predicated region
        $region94: #{image_classifier_forward.1} parent=76 // pred_check
          %p937 = pneg %p140
        $region95: #{image_classifier_forward.1} parent=76 // pred_check_branch
          %939 = sbr.rel (%p937) target = $region97
        $region96: #{image_classifier_forward.1} parent=76 // pred_region
          %940 = dma.done [#allocation5], 32
        $region97: #{image_classifier_forward.1} parent=76 // pred_fallthru
          _
      $region77: #{image_classifier_forward.1} parent=5 // pred_fallthru
        _
      %p941 = scmp.le.s32.totalorder 2, %s12
      // Predicated region
      $region98: #{image_classifier_forward.1} parent=5 // pred_check
        %p942 = pneg %p941
      $region99: #{image_classifier_forward.1} parent=5 // pred_check_branch
        %944 = sbr.rel (%p942) target = $region101
      $region100: #{image_classifier_forward.1} parent=5 // pred_region
        %s945 = ssub.s32 %s12, 2
      $region101: #{image_classifier_forward.1} parent=5 // pred_fallthru
        _
    $region6: #{image_classifier_forward.1} parent=1 // loop_footer
      %s16 = sadd.s32 1, %s12
    $region7: #{image_classifier_forward.1} parent=1 // loop_footer_branch
      %11 = sbr.rel target = $region3
    $region8: #{image_classifier_forward.1} parent=1 // loop_exit
      _
    %946 = vsyncpa [#allocation5], 1
    %s947 = scalar_lea.sflag [#allocation5], 1
    %948 = vsyncpa %s947, 1

</llo_original>
